<compile_context>
chip_gen: v7x
topology: tpu7x:2x2x1
jax: 0.10.0
libtpu: 0.0.40
codegen_flags: <defaults>
</compile_context>

<pallas_src>
import functools

import jax
import jax.numpy as jnp
from jax import lax
from jax.experimental import pallas as pl
from jax.experimental.pallas import tpu as pltpu


def _round_up(x, m):
    return (x + m - 1) // m * m


def _choose_tile(dim, max_tile, align):
    """Return (tile, padded_dim): tile is align-multiple, padded_dim % tile == 0."""
    padded = _round_up(dim, align)
    if padded <= max_tile:
        return padded, padded
    return max_tile, _round_up(padded, max_tile)


def _lm_classifier_kernel(seed_ref, x_ref, w_ref, b_ref, o_ref, acc_ref, *,
                          p: float, training: bool):
    i = pl.program_id(0)
    k = pl.program_id(2)
    nk = pl.num_programs(2)

    @pl.when(k == 0)
    def _():
        acc_ref[...] = jnp.zeros_like(acc_ref)

    x = x_ref[...]                                   # [tm, tk], native dtype
    if training and p > 0.0:
        # Inverted dropout.  Seed depends only on the (i, k) position of the x
        # tile (NOT on the output-column tile j) so every output column sees
        # the same dropped activations, matching nn.Dropout semantics.
        pltpu.prng_seed(seed_ref[0] + i * nk + k)
        bits = pltpu.bitcast(pltpu.prng_random_bits(x.shape), jnp.uint32)
        threshold = jnp.uint32(min(int(p * 4294967296.0), 4294967295))
        keep = bits >= threshold                     # P(keep) = 1 - p
        scale = jnp.asarray(1.0 / (1.0 - p), dtype=x.dtype)
        x = jnp.where(keep, x * scale, jnp.zeros_like(x))
    # TODO(synk): torch's dropout RNG stream is not reproduced bit-for-bit.

    # Linear: out = x @ W^T + b, with W kept in its torch [N, H] layout.
    acc_ref[...] += lax.dot_general(
        x, w_ref[...],
        dimension_numbers=(((1,), (1,)), ((), ())),
        preferred_element_type=jnp.float32)

    @pl.when(k == nk - 1)
    def _():
        o_ref[...] = (acc_ref[...]
                      + b_ref[...].astype(jnp.float32)).astype(o_ref.dtype)


def lm_classifier(x, weight, bias, *, p=0.1, training=False, seed=0,
                  tm_max=256, tn_max=512, tk_max=512):
    """x: [..., H]; weight: [N, H] (torch layout); bias: [N] -> [..., N]."""
    orig_shape = x.shape
    hidden = orig_shape[-1]
    n_classes = weight.shape[0]

    x2d = x.reshape(-1, hidden)
    m = x2d.shape[0]

    # (8, 128)-aligned, lane-dense padding; sliced off after the kernel.
    tm, m_pad = _choose_tile(m, tm_max, 8)
    tn, n_pad = _choose_tile(n_classes, tn_max, 128)
    tk, h_pad = _choose_tile(hidden, tk_max, 128)

    x_p = jnp.pad(x2d, ((0, m_pad - m), (0, h_pad - hidden)))
    w_p = jnp.pad(weight, ((0, n_pad - n_classes), (0, h_pad - hidden)))
    b_p = jnp.pad(bias, (0, n_pad - n_classes)).reshape(1, n_pad)
    seed_arr = jnp.array([seed], dtype=jnp.int32)

    grid = (m_pad // tm, n_pad // tn, h_pad // tk)
    out_dtype = x.dtype

    kernel = functools.partial(_lm_classifier_kernel, p=p, training=training)

    cost = pl.CostEstimate(
        flops=2 * m_pad * h_pad * n_pad,
        transcendentals=0,
        bytes_accessed=(m_pad * h_pad * x_p.dtype.itemsize
                        + n_pad * h_pad * w_p.dtype.itemsize
                        + m_pad * n_pad * jnp.dtype(out_dtype).itemsize))

    # double-buffered input/output tiles + resident f32 accumulator, with headroom
    tile_bytes = (tm * tk * x_p.dtype.itemsize
                  + tn * tk * w_p.dtype.itemsize
                  + tn * b_p.dtype.itemsize
                  + tm * tn * jnp.dtype(out_dtype).itemsize)
    vmem_limit = int(min(max(4 * tile_bytes + tm * tn * 4, 16 << 20), 48 << 20))

    out = pl.pallas_call(
        kernel,
        out_shape=jax.ShapeDtypeStruct((m_pad, n_pad), out_dtype),
        grid_spec=pltpu.PrefetchScalarGridSpec(
            num_scalar_prefetch=1,                     # seed lands in SMEM
            grid=grid,
            in_specs=[
                pl.BlockSpec((tm, tk), lambda i, j, k, seed: (i, k)),   # x
                pl.BlockSpec((tn, tk), lambda i, j, k, seed: (j, k)),   # W [N,H]
                pl.BlockSpec((1, tn), lambda i, j, k, seed: (0, j)),    # bias
            ],
            out_specs=pl.BlockSpec((tm, tn), lambda i, j, k, seed: (i, j)),
            scratch_shapes=[pltpu.VMEM((tm, tn), jnp.float32)],
        ),
        compiler_params=pltpu.CompilerParams(
            dimension_semantics=("parallel", "parallel", "arbitrary"),
            vmem_limit_bytes=vmem_limit),
        cost_estimate=cost,
    )(seed_arr, x_p, w_p, b_p)

    out = out[:m, :n_classes]
    return out.reshape(*orig_shape[:-1], n_classes)


if __name__ == "__main__":
    # small shapes implied by the forward: x is [batch, seq, hidden]
    batch, seq, hidden, n_classes = 2, 8, 32, 8

    key = jax.random.PRNGKey(0)
    kx, kw, kb = jax.random.split(key, 3)

    x = jax.random.normal(kx, (batch, seq, hidden), dtype=jnp.float32)
    # torch layout: weight [n_classes, hidden]
    weight = jax.random.normal(kw, (n_classes, hidden), dtype=jnp.float32) * 0.02
    bias = jax.random.normal(kb, (n_classes,), dtype=jnp.float32) * 0.02

    # eval mode: dropout is the identity
    out = lm_classifier(x, weight, bias, p=0.1, training=False)
    out = jax.block_until_ready(out)

    # sanity check against plain-JAX reference
    ref = x @ weight.T + bias
    assert out.shape == (batch, seq, n_classes)
    assert jnp.allclose(out, ref, atol=1e-5, rtol=1e-5)

    print("KERNEL_OK")
</pallas_src>

<mosaic_0001>
module attributes {stable_mosaic.version = 11 : i64} {
  func.func @_lm_classifier_kernel(%arg0: i32, %arg1: i32, %arg2: i32, %arg3: memref<1xi32, #tpu.memory_space<smem>>, %arg4: memref<16x128xf32, #tpu.memory_space<vmem>>, %arg5: memref<128x128xf32, #tpu.memory_space<vmem>>, %arg6: memref<1x128xf32, #tpu.memory_space<vmem>>, %arg7: memref<16x128xf32, #tpu.memory_space<vmem>>, %arg8: memref<16x128xf32, #tpu.memory_space<vmem>>) attributes {dimension_semantics = [#tpu.dimension_semantics<parallel>, #tpu.dimension_semantics<parallel>, #tpu.dimension_semantics<arbitrary>], iteration_bounds = array<i64: 1, 1, 1>, scalar_prefetch = 1 : i64, scratch_operands = 1 : i64, tpu.core_type = #tpu.core_type<tc>, window_params = [{transform_indices = @transform_0, window_bounds = array<i64: 16, 128>}, {transform_indices = @transform_1, window_bounds = array<i64: 128, 128>}, {transform_indices = @transform_2, window_bounds = array<i64: 1, 128>}, {transform_indices = @transform_3, window_bounds = array<i64: 16, 128>}]} {
    %c0_i32 = arith.constant 0 : i32
    %0 = arith.cmpi eq, %arg2, %c0_i32 : i32
    %1 = arith.extui %0 : i1 to i32
    %c0_i32_0 = arith.constant 0 : i32
    %2 = arith.cmpi ne, %1, %c0_i32_0 : i32
    scf.if %2 {
      %cst_10 = arith.constant 0.000000e+00 : f32
      %12 = vector.broadcast %cst_10 : f32 to vector<16x128xf32>
      %c0_11 = arith.constant 0 : index
      %c0_12 = arith.constant 0 : index
      %13 = vector.load %arg8[%c0_11, %c0_12] : memref<16x128xf32, #tpu.memory_space<vmem>>, vector<16x128xf32>
      tpu.vector_store %arg8[%c0_11, %c0_12], %12 {strides = array<i32>} : memref<16x128xf32, #tpu.memory_space<vmem>>, vector<16x128xf32>,
    } else {
    }
    %c0 = arith.constant 0 : index
    %c0_1 = arith.constant 0 : index
    %3 = vector.load %arg4[%c0, %c0_1] : memref<16x128xf32, #tpu.memory_space<vmem>>, vector<16x128xf32>
    %c0_2 = arith.constant 0 : index
    %c0_3 = arith.constant 0 : index
    %4 = vector.load %arg8[%c0_2, %c0_3] : memref<16x128xf32, #tpu.memory_space<vmem>>, vector<16x128xf32>
    %c0_4 = arith.constant 0 : index
    %c0_5 = arith.constant 0 : index
    %5 = vector.load %arg5[%c0_4, %c0_5] : memref<128x128xf32, #tpu.memory_space<vmem>>, vector<128x128xf32>
    %cst = arith.constant dense<0.000000e+00> : vector<16x128xf32>
    %6 = tpu.matmul %3, %5, %cst {dimension_numbers = #tpu.dot_dimension_numbers<[1], [1], [0], [0], [0, 0, 1, 0], [], []>} : vector<16x128xf32>, vector<128x128xf32>, vector<16x128xf32> -> vector<16x128xf32>
    %7 = arith.addf %4, %6 : vector<16x128xf32>
    %c0_6 = arith.constant 0 : index
    %c0_7 = arith.constant 0 : index
    %8 = vector.load %arg8[%c0_6, %c0_7] : memref<16x128xf32, #tpu.memory_space<vmem>>, vector<16x128xf32>
    tpu.vector_store %arg8[%c0_6, %c0_7], %7 {strides = array<i32>} : memref<16x128xf32, #tpu.memory_space<vmem>>, vector<16x128xf32>,
    %c0_i32_8 = arith.constant 0 : i32
    %9 = arith.cmpi eq, %arg2, %c0_i32_8 : i32
    %10 = arith.extui %9 : i1 to i32
    %c0_i32_9 = arith.constant 0 : i32
    %11 = arith.cmpi ne, %10, %c0_i32_9 : i32
    scf.if %11 {
      %c0_10 = arith.constant 0 : index
      %c0_11 = arith.constant 0 : index
      %12 = vector.load %arg8[%c0_10, %c0_11] : memref<16x128xf32, #tpu.memory_space<vmem>>, vector<16x128xf32>
      %c0_12 = arith.constant 0 : index
      %c0_13 = arith.constant 0 : index
      %13 = vector.load %arg6[%c0_12, %c0_13] : memref<1x128xf32, #tpu.memory_space<vmem>>, vector<1x128xf32>
      %14 = vector.broadcast %13 : vector<1x128xf32> to vector<16x128xf32>
      %15 = arith.addf %12, %14 : vector<16x128xf32>
      %c0_14 = arith.constant 0 : index
      %c0_15 = arith.constant 0 : index
      %16 = vector.load %arg7[%c0_14, %c0_15] : memref<16x128xf32, #tpu.memory_space<vmem>>, vector<16x128xf32>
      tpu.vector_store %arg7[%c0_14, %c0_15], %15 {strides = array<i32>} : memref<16x128xf32, #tpu.memory_space<vmem>>, vector<16x128xf32>,
    } else {
    }
    return
  }
  func.func @transform_0(%arg0: i32, %arg1: i32, %arg2: i32, %arg3: memref<1xi32, #tpu.memory_space<smem>>) -> (i32, i32) {
    %c0_i32 = arith.constant 0 : i32
    return %arg0, %arg2 : i32, i32
  }
  func.func @transform_1(%arg0: i32, %arg1: i32, %arg2: i32, %arg3: memref<1xi32, #tpu.memory_space<smem>>) -> (i32, i32) {
    %c0_i32 = arith.constant 0 : i32
    return %arg1, %arg2 : i32, i32
  }
  func.func @transform_2(%arg0: i32, %arg1: i32, %arg2: i32, %arg3: memref<1xi32, #tpu.memory_space<smem>>) -> (i32, i32) {
    %c0_i32 = arith.constant 0 : i32
    %c0_i32_0 = arith.constant 0 : i32
    return %c0_i32, %arg1 : i32, i32
  }
  func.func @transform_3(%arg0: i32, %arg1: i32, %arg2: i32, %arg3: memref<1xi32, #tpu.memory_space<smem>>) -> (i32, i32) {
    %c0_i32 = arith.constant 0 : i32
    return %arg0, %arg1 : i32, i32
  }
}

</mosaic_0001>

<llo_original>
// kernel: tpu_custom_call.1
$region0: #{tpu_custom_call.1}
  #allocation0 [shape = 'u32[]', space=smem, size = 0x4, offset = 0x4, fixed_abs, tag = 'smem constant byte address 0x4 - core index']
  #allocation1 [shape = 'u32[144,128]{1,0:T(1,128)}', space=vmem, size = 0x12000, scoped, tag = 'internal scratch']
  #allocation2 [shape = 'f32[16,128]{1,0:T(8,128)}', space=vmem, size = 0x2000, scoped, tag = 'scratch operand']
  #allocation3 [shape = 's32[1]{0}', space=sflag, size = 0x4, scoped, tag = 'scoped memory for tpu_custom_call.1']
  #allocation4 [shape = 's32[1]{0:T(128)S(6)}', space=smem, size = 0x200, scoped, tag = 'prefetched SMEM operand 0']
  %s0 = inlined_call_operand.<no memory space> [shape: s32[1], index: 0, kind: input, shape index: {}]
  %s1 = inlined_call_operand.hbm [shape: f32[16,128], index: 1, kind: input, shape index: {}]
  %s2 = inlined_call_operand.hbm [shape: f32[128,128], index: 2, kind: input, shape index: {}]
  %s3 = inlined_call_operand.vmem [shape: f32[1,128], index: 3, kind: input, shape index: {}]
  %s4 = inlined_call_operand.hbm [shape: f32[16,128], index: 4, kind: output, shape index: {}]
  %s5 = sld [smem:[#allocation0]]
  $region38: #{tpu_custom_call.1} parent=0
    _
  %s7 = ssub.s32 1, %s5
  %s8 = scalar_select 0, %s7, %s5
  %9 = sst [smem:[#allocation4]] %s0
  $region1: #{tpu_custom_call.1} parent=0
    #allocation5 [shape = 'u8[8192]{0}', space=vmem, size = 0x2000, scoped, tag = 'input window, operand 1, single buffered']
    #allocation6 [shape = 's32[1]{0}', space=sflag, size = 0x4, scoped, tag = 'scoped memory for tpu_custom_call.1']
    #allocation7 [shape = 's32[1]{0}', space=sflag, size = 0x4, scoped, tag = 'scoped memory for tpu_custom_call.1']
    #allocation8 [shape = 'u8[65536]{0}', space=vmem, size = 0x10000, scoped, tag = 'input window, operand 2, single buffered']
    #allocation9 [shape = 's32[1]{0}', space=sflag, size = 0x4, scoped, tag = 'scoped memory for tpu_custom_call.1']
    #allocation10 [shape = 'u8[8192]{0}', space=vmem, size = 0x2000, scoped, tag = 'output window, operand 0, single buffered']
    %10 = vsyncpa [#allocation6], 0
    %11 = vsyncpa [#allocation9], 0
    %12 = vsyncpa [#allocation7], 0
    // Predicated region
    $region2: #{tpu_custom_call.1} parent=1 // pred_check
      _
    $region3: #{tpu_custom_call.1} parent=1 // pred_check_branch
      %14 = sbr.rel (0) target = $region5
    $region4: #{tpu_custom_call.1} parent=1 // pred_region
      %s16 = ssub.s32 256, 256
      %17 = vsyncadd [#allocation6], %s16
      %s18 = sshll.u32 [#allocation5], 4
      %s19 = int_to_ptr.vmem [resolvable:$true] %s18
      %24 = dma.hbm_to_vmem [thread:$0]  %s1, 256, %s19, [#allocation6], 128, 128, 8
    $region5: #{tpu_custom_call.1} parent=1 // pred_fallthru
      _
    // Predicated region
    $region6: #{tpu_custom_call.1} parent=1 // pred_check
      _
    $region7: #{tpu_custom_call.1} parent=1 // pred_check_branch
      %26 = sbr.rel (0) target = $region9
    $region8: #{tpu_custom_call.1} parent=1 // pred_region
      %s28 = ssub.s32 2048, 2048
      %29 = vsyncadd [#allocation9], %s28
      %s30 = sshll.u32 [#allocation8], 4
      %s31 = int_to_ptr.vmem [resolvable:$true] %s30
      %36 = dma.hbm_to_vmem [thread:$0]  %s2, 2048, %s31, [#allocation9], 128, 128, 8
    $region9: #{tpu_custom_call.1} parent=1 // pred_fallthru
      _
    // Predicated region
    $region10: #{tpu_custom_call.1} parent=1 // pred_check
      _
    $region11: #{tpu_custom_call.1} parent=1 // pred_check_branch
      %38 = sbr.rel (0) target = $region13
    $region12: #{tpu_custom_call.1} parent=1 // pred_region
      _
    $region13: #{tpu_custom_call.1} parent=1 // pred_fallthru
      _
    // Predicated region
    $region14: #{tpu_custom_call.1} parent=1 // pred_check
      _
    $region15: #{tpu_custom_call.1} parent=1 // pred_check_branch
      %40 = sbr.rel (0) target = $region17
    $region16: #{tpu_custom_call.1} parent=1 // pred_region
      %41 = dma.done [#allocation6], 256
    $region17: #{tpu_custom_call.1} parent=1 // pred_fallthru
      _
    // Predicated region
    $region18: #{tpu_custom_call.1} parent=1 // pred_check
      _
    $region19: #{tpu_custom_call.1} parent=1 // pred_check_branch
      %43 = sbr.rel (0) target = $region21
    $region20: #{tpu_custom_call.1} parent=1 // pred_region
      %44 = dma.done [#allocation9], 2048
    $region21: #{tpu_custom_call.1} parent=1 // pred_fallthru
      _
    %p45 = scmp.eq.s32.totalorder 0, 0
    // Predicated region
    $region22: #{tpu_custom_call.1} parent=1 // pred_check
      %p46 = pneg %p45
    $region23: #{tpu_custom_call.1} parent=1 // pred_check_branch
      %48 = sbr.rel (%p46) target = $region25
    $region24: #{tpu_custom_call.1} parent=1 // pred_region
      %49 = vst [vmem:[#allocation2] sm:$0xff] 0.0
      %50 = vst [vmem:[#allocation2 + $0x8] sm:$0xff] 0.0
    $region25: #{tpu_custom_call.1} parent=1 // pred_fallthru
      _
    %v51 = vld [vmem:[#allocation5] sm:$0xff]
    %v52 = vld [vmem:[#allocation5 + $0x8] sm:$0xff]
    %v53 = vld [vmem:[#allocation2] sm:$0xff]
    %v54 = vld [vmem:[#allocation2 + $0x8] sm:$0xff]
    %v55 = vld [vmem:[#allocation8] sm:$0xff]
    %v56 = vld [vmem:[#allocation8 + $0x8] sm:$0xff]
    %v57 = vld [vmem:[#allocation8 + $0x10] sm:$0xff]
    %v58 = vld [vmem:[#allocation8 + $0x18] sm:$0xff]
    %v59 = vld [vmem:[#allocation8 + $0x20] sm:$0xff]
    %v60 = vld [vmem:[#allocation8 + $0x28] sm:$0xff]
    %v61 = vld [vmem:[#allocation8 + $0x30] sm:$0xff]
    %v62 = vld [vmem:[#allocation8 + $0x38] sm:$0xff]
    %v63 = vld [vmem:[#allocation8 + $0x40] sm:$0xff]
    %v64 = vld [vmem:[#allocation8 + $0x48] sm:$0xff]
    %v65 = vld [vmem:[#allocation8 + $0x50] sm:$0xff]
    %v66 = vld [vmem:[#allocation8 + $0x58] sm:$0xff]
    %v67 = vld [vmem:[#allocation8 + $0x60] sm:$0xff]
    %v68 = vld [vmem:[#allocation8 + $0x68] sm:$0xff]
    %v69 = vld [vmem:[#allocation8 + $0x70] sm:$0xff]
    %v70 = vld [vmem:[#allocation8 + $0x78] sm:$0xff]
    %71 = vmatprep.subr.mxu0 0.0
    %72 = vmatpush1.xpose.msra.mxu0 %v55
    %73 = vmatprep.subr.mxu0 0.0
    %74 = vmatpush1.xpose.msra.mxu0 %v56
    %75 = vmatprep.subr.mxu0 0.0
    %76 = vmatpush1.xpose.msra.mxu0 %v57
    %77 = vmatprep.subr.mxu0 0.0
    %78 = vmatpush1.xpose.msra.mxu0 %v58
    %79 = vmatprep.subr.mxu0 0.0
    %80 = vmatpush1.xpose.msra.mxu0 %v59
    %81 = vmatprep.subr.mxu0 0.0
    %82 = vmatpush1.xpose.msra.mxu0 %v60
    %83 = vmatprep.subr.mxu0 0.0
    %84 = vmatpush1.xpose.msra.mxu0 %v61
    %85 = vmatprep.subr.mxu0 0.0
    %86 = vmatpush1.xpose.msra.mxu0 %v62
    %87 = vmatprep.subr.mxu0 0.0
    %88 = vmatpush1.xpose.msra.mxu0 %v63
    %89 = vmatprep.subr.mxu0 0.0
    %90 = vmatpush1.xpose.msra.mxu0 %v64
    %91 = vmatprep.subr.mxu0 0.0
    %92 = vmatpush1.xpose.msra.mxu0 %v65
    %93 = vmatprep.subr.mxu0 0.0
    %94 = vmatpush1.xpose.msra.mxu0 %v66
    %95 = vmatprep.subr.mxu0 0.0
    %96 = vmatpush1.xpose.msra.mxu0 %v67
    %97 = vmatprep.subr.mxu0 0.0
    %98 = vmatpush1.xpose.msra.mxu0 %v68
    %99 = vmatprep.subr.mxu0 0.0
    %100 = vmatpush1.xpose.msra.mxu0 %v69
    %101 = vmatprep.subr.mxu0 0.0
    %102 = vmatpush1.xpose.msra.mxu0 %v70
    %103 = vmatprep.subr.mxu0 0.0
    %104 = vmatpush1.xpose.msra.mxu0 0.0
    %105 = vmatprep.subr.mxu0 0.0
    %106 = vmatpush1.xpose.msra.mxu0 0.0
    %107 = vmatprep.subr.mxu0 0.0
    %108 = vmatpush1.xpose.msra.mxu0 0.0
    %109 = vmatprep.subr.mxu0 0.0
    %110 = vmatpush1.xpose.msra.mxu0 0.0
    %111 = vmatprep.subr.mxu0 0.0
    %112 = vmatpush1.xpose.msra.mxu0 0.0
    %113 = vmatprep.subr.mxu0 0.0
    %114 = vmatpush1.xpose.msra.mxu0 0.0
    %115 = vmatprep.subr.mxu0 0.0
    %116 = vmatpush1.xpose.msra.mxu0 0.0
    %117 = vmatprep.subr.mxu0 0.0
    %118 = vmatpush1.xpose.msra.mxu0 0.0
    %119 = vmatprep.subr.mxu0 0.0
    %120 = vmatpush1.xpose.msra.mxu0 0.0
    %121 = vmatprep.subr.mxu0 0.0
    %122 = vmatpush1.xpose.msra.mxu0 0.0
    %123 = vmatprep.subr.mxu0 0.0
    %124 = vmatpush1.xpose.msra.mxu0 0.0
    %125 = vmatprep.subr.mxu0 0.0
    %126 = vmatpush1.xpose.msra.mxu0 0.0
    %127 = vmatprep.subr.mxu0 0.0
    %128 = vmatpush1.xpose.msra.mxu0 0.0
    %129 = vmatprep.subr.mxu0 0.0
    %130 = vmatpush1.xpose.msra.mxu0 0.0
    %131 = vmatprep.subr.mxu0 0.0
    %132 = vmatpush1.xpose.msra.mxu0 0.0
    %133 = vmatprep.subr.mxu0 0.0
    %134 = vmatpush1.xpose.msra.mxu0 0.0
    %135 = vmatprep.mubr.f32.mxu0 0.0
    %136 = vmatmul.mubr.f32.gmra.mrb[0].mxu0 %v51
    %v137 = vpop.f32.mrb[0].mxu0
    %v138 = vadd.f32 0.0, %v137
    %v139 = vpop.f32.mrb[0].mxu0
    %140 = vmatprep.mubr.f32.mxu0 0.0
    %141 = vmatmul.mubr.f32.gmra.mrb[0].mxu0 %v52
    %v142 = vpop.f32.mrb[0].mxu0
    %v143 = vadd.f32 0.0, %v142
    %v144 = vpop.f32.mrb[0].mxu0
    %145 = vdwg.mxu0
    %v146 = vadd.f32 %v53, %v138
    %v147 = vadd.f32 %v54, %v143
    %148 = vst [vmem:[#allocation2] sm:$0xff] %v146
    %149 = vst [vmem:[#allocation2 + $0x8] sm:$0xff] %v147
    // Predicated region
    $region26: #{tpu_custom_call.1} parent=1 // pred_check
      %p150 = pneg %p45
    $region27: #{tpu_custom_call.1} parent=1 // pred_check_branch
      %152 = sbr.rel (%p150) target = $region29
    $region28: #{tpu_custom_call.1} parent=1 // pred_region
      %v153 = vld [vmem:[#allocation2] sm:$0xff]
      %v154 = vld [vmem:[#allocation2 + $0x8] sm:$0xff]
      %v155 = vld [vmem:[%s3] sm:$0x1]
      %v157 = vlaneseq
      %v158 = vshrl.u32 %v157, 7
      %v159 = vsub.s32 0, %v158
      %v160 = vrot.slane %v155, %v159
      %v162 = vadd.f32 %v153, %v160
      %v163 = vadd.f32 %v154, %v160
      %164 = vst [vmem:[#allocation10] sm:$0xff] %v162
      %165 = vst [vmem:[#allocation10 + $0x8] sm:$0xff] %v163
    $region29: #{tpu_custom_call.1} parent=1 // pred_fallthru
      _
    // Predicated region
    $region30: #{tpu_custom_call.1} parent=1 // pred_check
      _
    $region31: #{tpu_custom_call.1} parent=1 // pred_check_branch
      %167 = sbr.rel (0) target = $region33
    $region32: #{tpu_custom_call.1} parent=1 // pred_region
      %s169 = ssub.s32 256, 256
      %170 = vsyncadd [#allocation7], %s169
      %s171 = sshll.u32 [#allocation10], 4
      %s172 = int_to_ptr.vmem [resolvable:$true] %s171
      %177 = dma.vmem_to_hbm [thread:$0]  %s172, 256, %s4, [#allocation7], 128, 128, 8
    $region33: #{tpu_custom_call.1} parent=1 // pred_fallthru
      _
    // Predicated region
    $region34: #{tpu_custom_call.1} parent=1 // pred_check
      _
    $region35: #{tpu_custom_call.1} parent=1 // pred_check_branch
      %179 = sbr.rel (0) target = $region37
    $region36: #{tpu_custom_call.1} parent=1 // pred_region
      %180 = dma.done [#allocation7], 256
    $region37: #{tpu_custom_call.1} parent=1 // pred_fallthru
      _
    %181 = vsyncpa [#allocation6], 1
    %182 = vsyncpa [#allocation9], 1
    %183 = vsyncpa [#allocation7], 1

</llo_original>
